<compile_context>
chip_gen: v7x
topology: tpu7x:2x2x1
jax: 0.10.0
libtpu: 0.0.40
codegen_flags: <defaults>
</compile_context>

<pallas_src>
import math

import jax
import jax.numpy as jnp
from jax.experimental import pallas as pl
from jax.experimental.pallas import tpu as pltpu


# ----------------------------- Pallas kernels --------------------------------
def _pool_conv_kernel(a_ref, b_ref, w_ref, bias_ref, o_ref):
    # a_ref, b_ref: (1, C_in, TL)   w_ref: (C_out, C_in)   bias_ref: (C_out, 1)
    # o_ref: (1, C_out, TL)         (TL on the lane axis -> lane-dense store)
    pooled = (a_ref[0] + b_ref[0]) * 0.5                       # VPU, (C_in, TL)
    acc = jnp.dot(w_ref[...], pooled,
                  preferred_element_type=jnp.float32)          # MXU, (C_out, TL)
    o_ref[0] = (acc + bias_ref[...]).astype(o_ref.dtype)


def _conv_kernel(x_ref, w_ref, bias_ref, o_ref):
    # 1x1 conv only (pool is Identity).
    acc = jnp.dot(w_ref[...], x_ref[0],
                  preferred_element_type=jnp.float32)
    o_ref[0] = (acc + bias_ref[...]).astype(o_ref.dtype)


def _pool_kernel(a_ref, b_ref, o_ref):
    # AvgPool only (conv is Identity).
    o_ref[0] = ((a_ref[0] + b_ref[0]) * 0.5).astype(o_ref.dtype)


# ----------------------------- helpers ---------------------------------------
def _pool_out_len(L, avg_stride):
    """Output length of AvgPool1d(2, avg_stride, ceil_mode=True, padding=0)."""
    L_out = int(math.ceil((L - 2) / avg_stride)) + 1
    # PyTorch ceil_mode rule: drop the last window if it starts past the input.
    if (L_out - 1) * avg_stride >= L:
        L_out -= 1
    return L_out


def _pool_operands(x_ncl, avg_stride):
    """Build (a, b) in NCL layout such that pooled = 0.5 * (a + b) reproduces
    AvgPool1d(2, avg_stride, ceil_mode=True, count_include_pad=False)."""
    L = x_ncl.shape[-1]
    L_out = _pool_out_len(L, avg_stride)
    last_start = (L_out - 1) * avg_stride
    xp = x_ncl
    if last_start + 1 >= L:
        # Partial (1-tap) last window: duplicate the last sample so that
        # 0.5 * (x[-1] + x[-1]) == x[-1]  (divisor = 1 semantics).
        xp = jnp.concatenate([x_ncl, x_ncl[:, :, -1:]], axis=-1)
    a = xp[:, :, 0:last_start + 1:avg_stride]                  # (B, C, L_out)
    b = xp[:, :, 1:last_start + 2:avg_stride]                  # (B, C, L_out)
    return a, b, L_out


def _pick_tile(L_out, max_tile=8192):
    """Largest lane-tile: full length if small/ragged, else a multiple of 128."""
    if L_out <= max_tile or L_out % 128 != 0:
        return L_out
    for t in range(max_tile, 127, -128):
        if L_out % t == 0:
            return t
    return L_out


def _seq_spec(C, TL):
    return pl.BlockSpec((1, C, TL), lambda bb, t: (bb, 0, t))


def _const_spec(shape):
    return pl.BlockSpec(shape, lambda bb, t: (0, 0))


def _run(kernel, inputs, in_specs, B, nT, C_out, TL, L_out, dtype):
    return pl.pallas_call(
        kernel,
        out_shape=jax.ShapeDtypeStruct((B, C_out, L_out), dtype),
        grid_spec=pltpu.PrefetchScalarGridSpec(
            num_scalar_prefetch=0,
            grid=(B, nT),
            in_specs=in_specs,
            out_specs=_seq_spec(C_out, TL),
        ),
        compiler_params=pltpu.CompilerParams(
            dimension_semantics=("parallel", "parallel")),
    )(*inputs)


# ----------------------------- public wrapper --------------------------------
def downsample_pallas(x_ncl, weight=None, bias=None, *, stride=1, dilation=1,
                      max_tile=8192):
    """x_ncl: (B, C_in, L) in PyTorch NCL layout.
    weight: (C_out, C_in) or (C_out, C_in, 1) 1x1-conv weight, or None when the
            module's conv is nn.Identity() (in_chs == out_chs).
    bias:   (C_out,) or None.
    Returns (B, C_out, L_out) matching Downsample.forward."""
    B, C_in, L = x_ncl.shape
    has_pool = stride > 1 or dilation > 1
    has_conv = weight is not None

    if not has_pool and not has_conv:
        return x_ncl                                            # Identity o Identity

    if has_pool:
        avg_stride = stride if dilation == 1 else 1
        a, b, L_out = _pool_operands(x_ncl, avg_stride)
    else:
        a, b, L_out = x_ncl, x_ncl, L

    TL = _pick_tile(L_out, max_tile)
    nT = L_out // TL

    if has_conv:
        C_out = weight.shape[0]
        w = jnp.asarray(weight).reshape(C_out, C_in).astype(x_ncl.dtype)
        b_col = (jnp.zeros((C_out,), jnp.float32) if bias is None
                 else jnp.asarray(bias).astype(jnp.float32)).reshape(C_out, 1)
        if has_pool:
            in_specs = [_seq_spec(C_in, TL), _seq_spec(C_in, TL),
                        _const_spec((C_out, C_in)), _const_spec((C_out, 1))]
            return _run(_pool_conv_kernel, (a, b, w, b_col), in_specs,
                        B, nT, C_out, TL, L_out, x_ncl.dtype)
        in_specs = [_seq_spec(C_in, TL),
                    _const_spec((C_out, C_in)), _const_spec((C_out, 1))]
        return _run(_conv_kernel, (x_ncl, w, b_col), in_specs,
                    B, nT, C_out, TL, L_out, x_ncl.dtype)

    # pool only (conv is Identity)
    in_specs = [_seq_spec(C_in, TL), _seq_spec(C_in, TL)]
    return _run(_pool_kernel, (a, b), in_specs,
                B, nT, C_in, TL, L_out, x_ncl.dtype)


# ----------------------------- pure-JAX reference ----------------------------
def downsample_ref(x_ncl, weight=None, bias=None, *, stride=1, dilation=1):
    xf = x_ncl.astype(jnp.float32)
    if stride > 1 or dilation > 1:
        s = stride if dilation == 1 else 1
        L = xf.shape[-1]
        L_out = _pool_out_len(L, s)
        cols = []
        for j in range(L_out):
            idx = [i for i in (j * s, j * s + 1) if i < L]
            cols.append(sum(xf[:, :, i] for i in idx) / len(idx))
        xf = jnp.stack(cols, axis=-1)
    if weight is not None:
        wf = jnp.asarray(weight).reshape(weight.shape[0], -1).astype(jnp.float32)
        xf = jnp.einsum("oc,bcl->bol", wf, xf)
        if bias is not None:
            xf = xf + jnp.asarray(bias).astype(jnp.float32)[None, :, None]
    return xf


# ------------------------------------ main -----------------------------------
if __name__ == "__main__":
    key = jax.random.PRNGKey(0)
    kx, kw, kb, kx2 = jax.random.split(key, 4)

    # Primary config: Downsample(in_chs=4, out_chs=8, stride=2, dilation=1)
    B, C_in, C_out, L = 2, 4, 8, 16
    x = jax.random.normal(kx, (B, C_in, L), dtype=jnp.float32)          # NCL
    conv_w = jax.random.normal(kw, (C_out, C_in), dtype=jnp.float32) * 0.1
    conv_b = jax.random.normal(kb, (C_out,), dtype=jnp.float32) * 0.1

    out = jax.block_until_ready(
        downsample_pallas(x, conv_w, conv_b, stride=2, dilation=1))
    ref = downsample_ref(x, conv_w, conv_b, stride=2, dilation=1)
    assert out.shape == (B, C_out, L // 2), out.shape
    assert jnp.allclose(out, ref, atol=1e-5, rtol=1e-5), \
        float(jnp.max(jnp.abs(out - ref)))

    # Odd L: exercises the ceil_mode partial (1-tap) last window.
    x_odd = jax.random.normal(kx2, (B, C_in, 17), dtype=jnp.float32)
    out2 = jax.block_until_ready(
        downsample_pallas(x_odd, conv_w, conv_b, stride=2, dilation=1))
    ref2 = downsample_ref(x_odd, conv_w, conv_b, stride=2, dilation=1)
    assert out2.shape == (B, C_out, 9), out2.shape
    assert jnp.allclose(out2, ref2, atol=1e-5, rtol=1e-5)

    # in_chs == out_chs -> conv is nn.Identity(): pool-only kernel.
    out3 = jax.block_until_ready(downsample_pallas(x, None, None, stride=2))
    ref3 = downsample_ref(x, None, None, stride=2)
    assert out3.shape == (B, C_in, 8), out3.shape
    assert jnp.allclose(out3, ref3, atol=1e-5, rtol=1e-5)

    # stride == dilation == 1 -> pool is nn.Identity(): conv-only kernel.
    out4 = jax.block_until_ready(downsample_pallas(x, conv_w, conv_b, stride=1))
    ref4 = downsample_ref(x, conv_w, conv_b, stride=1)
    assert out4.shape == (B, C_out, L), out4.shape
    assert jnp.allclose(out4, ref4, atol=1e-5, rtol=1e-5)

    # Both Identity -> passthrough.
    out5 = downsample_pallas(x, None, None, stride=1, dilation=1)
    assert jnp.allclose(out5, x)

    print("KERNEL_OK")
</pallas_src>

<mosaic_0001>
module attributes {stable_mosaic.version = 11 : i64} {
  func.func @_pool_conv_kernel(%arg0: i32, %arg1: i32, %arg2: memref<1x4x8xf32, #tpu.memory_space<vmem>>, %arg3: memref<1x4x8xf32, #tpu.memory_space<vmem>>, %arg4: memref<8x4xf32, #tpu.memory_space<vmem>>, %arg5: memref<8x1xf32, #tpu.memory_space<vmem>>, %arg6: memref<1x8x8xf32, #tpu.memory_space<vmem>>) attributes {dimension_semantics = [#tpu.dimension_semantics<parallel>, #tpu.dimension_semantics<parallel>], iteration_bounds = array<i64: 2, 1>, scalar_prefetch = 0 : i64, scratch_operands = 0 : i64, tpu.core_type = #tpu.core_type<tc>, window_params = [{transform_indices = @transform_0, window_bounds = array<i64: 1, 4, 8>}, {transform_indices = @transform_1, window_bounds = array<i64: 1, 4, 8>}, {pipeline_mode = #tpu.pipeline_mode<synchronous>, transform_indices = @transform_2, window_bounds = array<i64: 8, 4>}, {pipeline_mode = #tpu.pipeline_mode<synchronous>, transform_indices = @transform_3, window_bounds = array<i64: 8, 1>}, {transform_indices = @transform_4, window_bounds = array<i64: 1, 8, 8>}]} {
    %c0 = arith.constant 0 : index
    %c0_0 = arith.constant 0 : index
    %c0_1 = arith.constant 0 : index
    %0 = vector.load %arg2[%c0, %c0_0, %c0_1] : memref<1x4x8xf32, #tpu.memory_space<vmem>>, vector<1x4x8xf32>
    %1 = vector.shape_cast %0 : vector<1x4x8xf32> to vector<4x8xf32>
    %c0_2 = arith.constant 0 : index
    %c0_3 = arith.constant 0 : index
    %c0_4 = arith.constant 0 : index
    %2 = vector.load %arg3[%c0_2, %c0_3, %c0_4] : memref<1x4x8xf32, #tpu.memory_space<vmem>>, vector<1x4x8xf32>
    %3 = vector.shape_cast %2 : vector<1x4x8xf32> to vector<4x8xf32>
    %4 = arith.addf %1, %3 : vector<4x8xf32>
    %cst = arith.constant 5.000000e-01 : f32
    %5 = vector.broadcast %cst : f32 to vector<4x8xf32>
    %6 = arith.mulf %4, %5 : vector<4x8xf32>
    %c0_5 = arith.constant 0 : index
    %c0_6 = arith.constant 0 : index
    %7 = vector.load %arg4[%c0_5, %c0_6] : memref<8x4xf32, #tpu.memory_space<vmem>>, vector<8x4xf32>
    %cst_7 = arith.constant dense<0.000000e+00> : vector<8x8xf32>
    %8 = tpu.matmul %7, %6, %cst_7 {dimension_numbers = #tpu.dot_dimension_numbers<[1], [0], [0], [1], [0, 0, 1, 1], [], []>} : vector<8x4xf32>, vector<4x8xf32>, vector<8x8xf32> -> vector<8x8xf32>
    %c0_8 = arith.constant 0 : index
    %c0_9 = arith.constant 0 : index
    %9 = vector.load %arg5[%c0_8, %c0_9] : memref<8x1xf32, #tpu.memory_space<vmem>>, vector<8x1xf32>
    %10 = vector.broadcast %9 : vector<8x1xf32> to vector<8x8xf32>
    %11 = arith.addf %8, %10 : vector<8x8xf32>
    %c0_10 = arith.constant 0 : index
    %c0_11 = arith.constant 0 : index
    %c0_12 = arith.constant 0 : index
    %12 = vector.load %arg6[%c0_10, %c0_11, %c0_12] : memref<1x8x8xf32, #tpu.memory_space<vmem>>, vector<1x8x8xf32>
    %13 = vector.shape_cast %12 : vector<1x8x8xf32> to vector<8x8xf32>
    %14 = vector.shape_cast %11 : vector<8x8xf32> to vector<1x8x8xf32>
    tpu.vector_store %arg6[%c0_10, %c0_11, %c0_12], %14 {strides = array<i32>} : memref<1x8x8xf32, #tpu.memory_space<vmem>>, vector<1x8x8xf32>,
    return
  }
  func.func @transform_0(%arg0: i32, %arg1: i32) -> (i32, i32, i32) {
    %c0_i32 = arith.constant 0 : i32
    %c0_i32_0 = arith.constant 0 : i32
    return %arg0, %c0_i32, %arg1 : i32, i32, i32
  }
  func.func @transform_1(%arg0: i32, %arg1: i32) -> (i32, i32, i32) {
    %c0_i32 = arith.constant 0 : i32
    %c0_i32_0 = arith.constant 0 : i32
    return %arg0, %c0_i32, %arg1 : i32, i32, i32
  }
  func.func @transform_2(%arg0: i32, %arg1: i32) -> (i32, i32) {
    %c0_i32 = arith.constant 0 : i32
    %c0_i32_0 = arith.constant 0 : i32
    %c0_i32_1 = arith.constant 0 : i32
    return %c0_i32, %c0_i32_0 : i32, i32
  }
  func.func @transform_3(%arg0: i32, %arg1: i32) -> (i32, i32) {
    %c0_i32 = arith.constant 0 : i32
    %c0_i32_0 = arith.constant 0 : i32
    %c0_i32_1 = arith.constant 0 : i32
    return %c0_i32, %c0_i32_0 : i32, i32
  }
  func.func @transform_4(%arg0: i32, %arg1: i32) -> (i32, i32, i32) {
    %c0_i32 = arith.constant 0 : i32
    %c0_i32_0 = arith.constant 0 : i32
    return %arg0, %c0_i32, %arg1 : i32, i32, i32
  }
}

</mosaic_0001>

<llo_original>
// kernel: tpu_custom_call.1
$region0: #{tpu_custom_call.1}
  #allocation0 [shape = 'u32[]', space=smem, size = 0x4, offset = 0x4, fixed_abs, tag = 'smem constant byte address 0x4 - core index']
  #allocation1 [shape = 'u32[144,128]{1,0:T(1,128)}', space=vmem, size = 0x12000, scoped, tag = 'internal scratch']
  %s0 = inlined_call_operand.vmem [shape: f32[2,4,8], index: 0, kind: input, shape index: {}]
  %s1 = inlined_call_operand.vmem [shape: f32[2,4,8], index: 1, kind: input, shape index: {}]
  %s2 = inlined_call_operand.vmem [shape: f32[8,4], index: 2, kind: input, shape index: {}]
  %s3 = inlined_call_operand.vmem [shape: f32[8,1], index: 3, kind: input, shape index: {}]
  %s4 = inlined_call_operand.hbm [shape: f32[2,8,8], index: 4, kind: output, shape index: {}]
  %s5 = sld [smem:[#allocation0]]
  $region49: #{tpu_custom_call.1} parent=0
    _
  %s7 = ssub.s32 1, %s5
  %s8 = scalar_select 0, %s7, %s5
  $region1: #{tpu_custom_call.1} parent=0
    #allocation2 [shape = 'u8[8192]{0}', space=vmem, size = 0x2000, scoped, tag = 'output window, operand 0']
    #allocation3 [shape = 's32[2]{0}', space=sflag, size = 0x8, scoped, tag = 'scoped memory for tpu_custom_call.1']
    %9 = vsyncpa [#allocation3], 0
    %s10 = scalar_lea.sflag [#allocation3], 1
    %11 = vsyncpa %s10, 0
    loop: start=0, step=1, limit=4
    $region2: #{tpu_custom_call.1} parent=1 // loop_pre_header
      _
    $region3: #{tpu_custom_call.1} parent=1 // loop_header
      %s13 = sphi 0, %s17
      %p14 = scmp.ge.s32.totalorder %s13, 4
      %s20 = sphi 0, %s32
      %s21 = sphi 0, %s28
      %s22 = sphi 0, %s20
      %s23 = sphi 0, %s21
      %s24 = sphi 0, %s22
      %s25 = sphi 0, %s23
      %s37 = sphi 0, %s39
      %s40 = sphi 0, %s37
      %s41 = sphi 0, %s40
      %s57 = sphi 0, %s41
      %s65 = sphi 0, %s67
      %s68 = sphi 0, %s65
      %s69 = sphi 0, %s68
      %s85 = sphi 0, %s69
      %s89 = sphi 0, %s89
      %s91 = sphi 0, %s89
      %s92 = sphi 0, %s91
      %s106 = sphi 0, %s92
      %s110 = sphi 0, %s110
      %s112 = sphi 0, %s110
      %s113 = sphi 0, %s112
      %s127 = sphi 0, %s113
      %s135 = sphi 0, %s137
      %s138 = sphi 0, %s135
      %s139 = sphi 0, %s138
      %s155 = sphi 0, %s139
    $region4: #{tpu_custom_call.1} parent=1 // loop_header_branch
      %16 = sbr.rel (%p14) target = $region8
    $region5: #{tpu_custom_call.1} parent=1 // loop_body
      %s18 = ssub.s32 %s13, 1
      %s19 = ssub.s32 %s13, 2
      %s26 = sadd.s32 1, %s21
      %p27 = scmp.ge.s32.totalorder %s26, 1
      %s28 = scalar_select %p27, 0, %s26
      %s29 = sadd.s32 1, %s20
      %s30 = scalar_select %p27, %s29, %s20
      %p31 = scmp.ge.s32.totalorder %s30, 2
      %s32 = scalar_select %p31, 0, %s30
      %s33 = ssub.s32 %s20, %s32
      %s34 = ssub.s32 %s21, %s28
      %s35 = sor.u32 %s33, %s34
      %p36 = scmp.eq.s32.totalorder %s35, 0
      %s38 = sadd.s32 %s37, 1
      %s39 = scalar_select %p36, %s37, %s38
      %p42 = pneg %p36
      %p43 = scmp.eq.s32.totalorder %s13, 1
      %p44 = por %p42, %p43
      %p45 = scmp.ne.s32.totalorder %s37, %s40
      %p46 = scmp.eq.s32.totalorder %s13, 0
      %p47 = por %p45, %p46
      %p48 = scmp.ne.s32.totalorder %s37, %s40
      %p49 = scmp.eq.s32.totalorder %s18, 1
      %p50 = por %p48, %p49
      %p51 = scmp.ne.s32.totalorder %s40, %s41
      %p52 = scmp.eq.s32.totalorder %s18, 0
      %p53 = por %p51, %p52
      %p54 = scmp.ne.s32.totalorder %s40, %s41
      %p55 = scmp.eq.s32.totalorder %s19, 1
      %p56 = por %p54, %p55
      %p58 = scmp.ne.s32.totalorder %s41, %s57
      %p59 = scmp.eq.s32.totalorder %s19, 0
      %p60 = por %p58, %p59
      %s61 = ssub.s32 %s20, %s32
      %s62 = ssub.s32 %s21, %s28
      %s63 = sor.u32 %s61, %s62
      %p64 = scmp.eq.s32.totalorder %s63, 0
      %s66 = sadd.s32 %s65, 1
      %s67 = scalar_select %p64, %s65, %s66
      %p70 = pneg %p64
      %p71 = scmp.eq.s32.totalorder %s13, 1
      %p72 = por %p70, %p71
      %p73 = scmp.ne.s32.totalorder %s65, %s68
      %p74 = scmp.eq.s32.totalorder %s13, 0
      %p75 = por %p73, %p74
      %p76 = scmp.ne.s32.totalorder %s65, %s68
      %p77 = scmp.eq.s32.totalorder %s18, 1
      %p78 = por %p76, %p77
      %p79 = scmp.ne.s32.totalorder %s68, %s69
      %p80 = scmp.eq.s32.totalorder %s18, 0
      %p81 = por %p79, %p80
      %p82 = scmp.ne.s32.totalorder %s68, %s69
      %p83 = scmp.eq.s32.totalorder %s19, 1
      %p84 = por %p82, %p83
      %p86 = scmp.ne.s32.totalorder %s69, %s85
      %p87 = scmp.eq.s32.totalorder %s19, 0
      %p88 = por %p86, %p87
      %s90 = sadd.s32 %s89, 1
      %p93 = scmp.eq.s32.totalorder %s13, 1
      %p94 = scmp.ne.s32.totalorder %s89, %s91
      %p95 = scmp.eq.s32.totalorder %s13, 0
      %p96 = por %p94, %p95
      %p97 = scmp.ne.s32.totalorder %s89, %s91
      %p98 = scmp.eq.s32.totalorder %s18, 1
      %p99 = por %p97, %p98
      %p100 = scmp.ne.s32.totalorder %s91, %s92
      %p101 = scmp.eq.s32.totalorder %s18, 0
      %p102 = por %p100, %p101
      %p103 = scmp.ne.s32.totalorder %s91, %s92
      %p104 = scmp.eq.s32.totalorder %s19, 1
      %p105 = por %p103, %p104
      %p107 = scmp.ne.s32.totalorder %s92, %s106
      %p108 = scmp.eq.s32.totalorder %s19, 0
      %p109 = por %p107, %p108
      %s111 = sadd.s32 %s110, 1
      %p114 = scmp.eq.s32.totalorder %s13, 1
      %p115 = scmp.ne.s32.totalorder %s110, %s112
      %p116 = scmp.eq.s32.totalorder %s13, 0
      %p117 = por %p115, %p116
      %p118 = scmp.ne.s32.totalorder %s110, %s112
      %p119 = scmp.eq.s32.totalorder %s18, 1
      %p120 = por %p118, %p119
      %p121 = scmp.ne.s32.totalorder %s112, %s113
      %p122 = scmp.eq.s32.totalorder %s18, 0
      %p123 = por %p121, %p122
      %p124 = scmp.ne.s32.totalorder %s112, %s113
      %p125 = scmp.eq.s32.totalorder %s19, 1
      %p126 = por %p124, %p125
      %p128 = scmp.ne.s32.totalorder %s113, %s127
      %p129 = scmp.eq.s32.totalorder %s19, 0
      %p130 = por %p128, %p129
      %s131 = ssub.s32 %s20, %s32
      %s132 = ssub.s32 %s21, %s28
      %s133 = sor.u32 %s131, %s132
      %p134 = scmp.eq.s32.totalorder %s133, 0
      %s136 = sadd.s32 %s135, 1
      %s137 = scalar_select %p134, %s135, %s136
      %p140 = pneg %p134
      %p141 = scmp.eq.s32.totalorder %s13, 1
      %p142 = por %p140, %p141
      %p143 = scmp.ne.s32.totalorder %s135, %s138
      %p144 = scmp.eq.s32.totalorder %s13, 0
      %p145 = por %p143, %p144
      %p146 = scmp.ne.s32.totalorder %s135, %s138
      %p147 = scmp.eq.s32.totalorder %s18, 1
      %p148 = por %p146, %p147
      %p149 = scmp.ne.s32.totalorder %s138, %s139
      %p150 = scmp.eq.s32.totalorder %s18, 0
      %p151 = por %p149, %p150
      %p152 = scmp.ne.s32.totalorder %s138, %s139
      %p153 = scmp.eq.s32.totalorder %s19, 1
      %p154 = por %p152, %p153
      %p156 = scmp.ne.s32.totalorder %s139, %s155
      %p157 = scmp.eq.s32.totalorder %s19, 0
      %p158 = por %p156, %p157
      %p159 = scmp.le.s32.totalorder 1, %s13
      %p160 = scmp.lt.s32.totalorder %s13, 3
      %p161 = pnand %p159, %p160
      %p162 = pneg %p161
      // Predicated region
      $region9: #{tpu_custom_call.1} parent=5 // pred_check
        _
      $region10: #{tpu_custom_call.1} parent=5 // pred_check_branch
        %164 = sbr.rel (%p161) target = $region12
      $region11: #{tpu_custom_call.1} parent=5 // pred_region
        %s165 = ssub.s32 %s13, 1
        // Predicated region
        $region13: #{tpu_custom_call.1} parent=11 // pred_check
          %p166 = pneg %p102
        $region14: #{tpu_custom_call.1} parent=11 // pred_check_branch
          %168 = sbr.rel (%p166) target = $region16
        $region15: #{tpu_custom_call.1} parent=11 // pred_region
          _
        $region16: #{tpu_custom_call.1} parent=11 // pred_fallthru
          _
        // Predicated region
        $region17: #{tpu_custom_call.1} parent=11 // pred_check
          %p169 = pneg %p123
        $region18: #{tpu_custom_call.1} parent=11 // pred_check_branch
          %171 = sbr.rel (%p169) target = $region20
        $region19: #{tpu_custom_call.1} parent=11 // pred_region
          _
        $region20: #{tpu_custom_call.1} parent=11 // pred_fallthru
          _
      $region12: #{tpu_custom_call.1} parent=5 // pred_fallthru
        _
      %p172 = scmp.lt.s32.totalorder %s13, 2
      // Predicated region
      $region21: #{tpu_custom_call.1} parent=5 // pred_check
        %p173 = pneg %p172
      $region22: #{tpu_custom_call.1} parent=5 // pred_check_branch
        %175 = sbr.rel (%p173) target = $region24
      $region23: #{tpu_custom_call.1} parent=5 // pred_region
        // Predicated region
        $region25: #{tpu_custom_call.1} parent=23 // pred_check
          %p176 = pneg %p47
        $region26: #{tpu_custom_call.1} parent=23 // pred_check_branch
          %178 = sbr.rel (%p176) target = $region28
        $region27: #{tpu_custom_call.1} parent=23 // pred_region
          %p179 = scmp.lt.s32.totalorder %s20, 1
          %s180 = scalar_select %p179, %s20, 1
          %p181 = scmp.lt.s32.totalorder %s21, 0
          %s182 = scalar_select %p181, %s21, 0
          %s183 = sadd.s32 %s182, %s180
          %s184 = smul.addr %s183, 4
          %s185 = scalar_lea.vmem %s0, %s184
        $region28: #{tpu_custom_call.1} parent=23 // pred_fallthru
          _
        // Predicated region
        $region29: #{tpu_custom_call.1} parent=23 // pred_check
          %p186 = pneg %p75
        $region30: #{tpu_custom_call.1} parent=23 // pred_check_branch
          %188 = sbr.rel (%p186) target = $region32
        $region31: #{tpu_custom_call.1} parent=23 // pred_region
          %p189 = scmp.lt.s32.totalorder %s20, 1
          %s190 = scalar_select %p189, %s20, 1
          %p191 = scmp.lt.s32.totalorder %s21, 0
          %s192 = scalar_select %p191, %s21, 0
          %s193 = sadd.s32 %s192, %s190
          %s194 = smul.addr %s193, 4
          %s195 = scalar_lea.vmem %s1, %s194
        $region32: #{tpu_custom_call.1} parent=23 // pred_fallthru
          _
      $region24: #{tpu_custom_call.1} parent=5 // pred_fallthru
        _
      %p196 = scmp.le.s32.totalorder 1, %s13
      %p197 = scmp.lt.s32.totalorder %s13, 3
      %p198 = pnand %p196, %p197
      %p199 = pneg %p198
      // Predicated region
      $region33: #{tpu_custom_call.1} parent=5 // pred_check
        _
      $region34: #{tpu_custom_call.1} parent=5 // pred_check_branch
        %201 = sbr.rel (%p198) target = $region36
      $region35: #{tpu_custom_call.1} parent=5 // pred_region
        %s202 = ssub.s32 %s13, 1
        %p203 = scmp.lt.s32.totalorder %s22, 1
        %s204 = scalar_select %p203, %s22, 1
        %p205 = scmp.lt.s32.totalorder %s23, 0
        %s206 = scalar_select %p205, %s23, 0
        %s207 = sadd.s32 %s206, %s204
        %s208 = smul.addr %s207, 4
        %s209 = scalar_lea.vmem %s0, %s208
        %p210 = pneg %p53
        %p211 = pneg %p50
        %p212 = scmp.lt.s32.totalorder %s22, 1
        %s213 = scalar_select %p212, %s22, 1
        %p214 = scmp.lt.s32.totalorder %s23, 0
        %s215 = scalar_select %p214, %s23, 0
        %s216 = sadd.s32 %s215, %s213
        %s217 = smul.addr %s216, 4
        %s218 = scalar_lea.vmem %s1, %s217
        %p219 = pneg %p81
        %p220 = pneg %p78
        %p221 = pneg %p102
        %p222 = pneg %p99
        %p223 = pneg %p123
        %p224 = pneg %p120
        %p225 = pneg %p151
        %p226 = pneg %p148
        %s227 = sand.u32 %s138, 1
        %s228 = scalar_lea.sflag [#allocation3], %s227
        %s229 = sand.u32 %s138, 1
        %s230 = smul.addr %s229, 8
        %s231 = scalar_lea.vmem [#allocation2], %s230
        %p232 = scmp.lt.s32.totalorder %s22, 1
        %s233 = scalar_select %p232, %s22, 1
        %p234 = scmp.lt.s32.totalorder %s23, 0
        %s235 = scalar_select %p234, %s23, 0
        %s236 = sadd.s32 %s235, %s233
        %s237 = smul.addr %s236, 4
        %s238 = scalar_lea.vmem %s0, %s237
        %p239 = scmp.lt.s32.totalorder %s22, 1
        %s240 = scalar_select %p239, %s22, 1
        %p241 = scmp.lt.s32.totalorder %s23, 0
        %s242 = scalar_select %p241, %s23, 0
        %s243 = sadd.s32 %s242, %s240
        %s244 = smul.addr %s243, 4
        %s245 = scalar_lea.vmem %s1, %s244
        %v246 = vld [vmem:[%s238] sm:$0xf]
        %v247 = vld [vmem:[%s245] sm:$0xf]
        %v248 = vadd.f32 %v246, %v247
        %v249 = vmul.f32 %v248, 0.5
        %v250 = vld [vmem:[%s2] sm:$0xff]
        %v251 = vld [vmem:[%s3] sm:$0xff]
        %253 = vset.pattern.permute.xlu0 0
        %254 = vperm.xlu0 %253, %v251
        %v255 = vpop.permute.xlu0 %254
        %vm257 = vcmask 31744
        %v259 = vsel %vm257, %v250, 0
        %vm261 = vcmask 1043456
        %v263 = vsel %vm261, %v249, 0
        %265 = vmatprep.subr.mxu0 0.0
        %266 = vmatpush1.msra.mxu0 %v263
        %267 = vmatprep.subr.mxu0 0.0
        %268 = vmatpush1.msra.mxu0 0.0
        %269 = vmatprep.subr.mxu0 0.0
        %270 = vmatpush1.msra.mxu0 0.0
        %271 = vmatprep.subr.mxu0 0.0
        %272 = vmatpush1.msra.mxu0 0.0
        %273 = vmatprep.subr.mxu0 0.0
        %274 = vmatpush1.msra.mxu0 0.0
        %275 = vmatprep.subr.mxu0 0.0
        %276 = vmatpush1.msra.mxu0 0.0
        %277 = vmatprep.subr.mxu0 0.0
        %278 = vmatpush1.msra.mxu0 0.0
        %279 = vmatprep.subr.mxu0 0.0
        %280 = vmatpush1.msra.mxu0 0.0
        %281 = vmatprep.subr.mxu0 0.0
        %282 = vmatpush1.msra.mxu0 0.0
        %283 = vmatprep.subr.mxu0 0.0
        %284 = vmatpush1.msra.mxu0 0.0
        %285 = vmatprep.subr.mxu0 0.0
        %286 = vmatpush1.msra.mxu0 0.0
        %287 = vmatprep.subr.mxu0 0.0
        %288 = vmatpush1.msra.mxu0 0.0
        %289 = vmatprep.subr.mxu0 0.0
        %290 = vmatpush1.msra.mxu0 0.0
        %291 = vmatprep.subr.mxu0 0.0
        %292 = vmatpush1.msra.mxu0 0.0
        %293 = vmatprep.subr.mxu0 0.0
        %294 = vmatpush1.msra.mxu0 0.0
        %295 = vmatprep.subr.mxu0 0.0
        %296 = vmatpush1.msra.mxu0 0.0
        %297 = vmatprep.subr.mxu0 0.0
        %298 = vmatpush1.msra.mxu0 0.0
        %299 = vmatprep.subr.mxu0 0.0
        %300 = vmatpush1.msra.mxu0 0.0
        %301 = vmatprep.subr.mxu0 0.0
        %302 = vmatpush1.msra.mxu0 0.0
        %303 = vmatprep.subr.mxu0 0.0
        %304 = vmatpush1.msra.mxu0 0.0
        %305 = vmatprep.subr.mxu0 0.0
        %306 = vmatpush1.msra.mxu0 0.0
        %307 = vmatprep.subr.mxu0 0.0
        %308 = vmatpush1.msra.mxu0 0.0
        %309 = vmatprep.subr.mxu0 0.0
        %310 = vmatpush1.msra.mxu0 0.0
        %311 = vmatprep.subr.mxu0 0.0
        %312 = vmatpush1.msra.mxu0 0.0
        %313 = vmatprep.subr.mxu0 0.0
        %314 = vmatpush1.msra.mxu0 0.0
        %315 = vmatprep.subr.mxu0 0.0
        %316 = vmatpush1.msra.mxu0 0.0
        %317 = vmatprep.subr.mxu0 0.0
        %318 = vmatpush1.msra.mxu0 0.0
        %319 = vmatprep.subr.mxu0 0.0
        %320 = vmatpush1.msra.mxu0 0.0
        %321 = vmatprep.subr.mxu0 0.0
        %322 = vmatpush1.msra.mxu0 0.0
        %323 = vmatprep.subr.mxu0 0.0
        %324 = vmatpush1.msra.mxu0 0.0
        %325 = vmatprep.subr.mxu0 0.0
        %326 = vmatpush1.msra.mxu0 0.0
        %327 = vmatprep.subr.mxu0 0.0
        %328 = vmatpush1.msra.mxu0 0.0
        %329 = vmatprep.mubr.f32.mxu0 0.0
        %330 = vmatmul.mubr.f32.gmra.mrb[0].mxu0 %v259
        %v331 = vpop.f32.mrb[0].mxu0
        %v332 = vadd.f32 %v255, %v331
        %v333 = vpop.f32.mrb[0].mxu0
        %334 = vdwg.mxu0
        %vm335 = vcmask 64512
        %336 = vst.msk [vmem:[%s231] sm:$0xff] %vm335, %v332
        %s337 = sand.u32 %s138, 1
        %s338 = scalar_lea.sflag [#allocation3], %s337
        %s339 = sand.u32 %s138, 1
        %s340 = smul.addr %s339, 8
        %s341 = scalar_lea.vmem [#allocation2], %s340
        // Predicated region
        $region37: #{tpu_custom_call.1} parent=35 // pred_check
          %p342 = pneg %p148
        $region38: #{tpu_custom_call.1} parent=35 // pred_check_branch
          %344 = sbr.rel (%p342) target = $region40
        $region39: #{tpu_custom_call.1} parent=35 // pred_region
          %s346 = ssub.s32 128, 128
          %347 = vsyncadd %s338, %s346
          %s348 = sadd.s32 %s23, %s22
          %s349 = smul.addr %s348, 128
          %s350 = scalar_lea.hbm %s4, %s349
          %s352 = sshll.u32 %s341, 4
          %s353 = int_to_ptr.vmem [resolvable:$true] %s352
          %355 = dma.vmem_to_hbm [thread:$0]  %s353, 128, %s350, %s338
        $region40: #{tpu_custom_call.1} parent=35 // pred_fallthru
          _
      $region36: #{tpu_custom_call.1} parent=5 // pred_fallthru
        _
      %p356 = scmp.le.s32.totalorder 2, %s13
      // Predicated region
      $region41: #{tpu_custom_call.1} parent=5 // pred_check
        %p357 = pneg %p356
      $region42: #{tpu_custom_call.1} parent=5 // pred_check_branch
        %359 = sbr.rel (%p357) target = $region44
      $region43: #{tpu_custom_call.1} parent=5 // pred_region
        %s360 = ssub.s32 %s13, 2
        // Predicated region
        $region45: #{tpu_custom_call.1} parent=43 // pred_check
          %p361 = pneg %p154
        $region46: #{tpu_custom_call.1} parent=43 // pred_check_branch
          %363 = sbr.rel (%p361) target = $region48
        $region47: #{tpu_custom_call.1} parent=43 // pred_region
          %s364 = sand.u32 %s139, 1
          %s365 = scalar_lea.sflag [#allocation3], %s364
          %s366 = sand.u32 %s139, 1
          %s367 = smul.addr %s366, 8
          %s368 = scalar_lea.vmem [#allocation2], %s367
          %369 = dma.done %s365, 128
        $region48: #{tpu_custom_call.1} parent=43 // pred_fallthru
          _
      $region44: #{tpu_custom_call.1} parent=5 // pred_fallthru
        _
    $region6: #{tpu_custom_call.1} parent=1 // loop_footer
      %s17 = sadd.s32 1, %s13
    $region7: #{tpu_custom_call.1} parent=1 // loop_footer_branch
      %12 = sbr.rel target = $region3
    $region8: #{tpu_custom_call.1} parent=1 // loop_exit
      _
    %370 = vsyncpa [#allocation3], 1
    %s371 = scalar_lea.sflag [#allocation3], 1
    %372 = vsyncpa %s371, 1

</llo_original>
